<compile_context>
chip_gen: v7x
topology: tpu7x:2x2x1
jax: 0.10.0
libtpu: 0.0.40
codegen_flags: <defaults>
</compile_context>

<pallas_src>
import jax
import jax.numpy as jnp
from jax.experimental import pallas as pl
from jax.experimental.pallas import tpu as pltpu


# Per-block byte budget (see header: safe for v5e/v6e/v7x scoped VMEM).
_BLOCK_BYTE_BUDGET = 2 << 20
# Below ~2 MiB of output, launch overhead dominates -> plain jnp slice.
_MIN_OUT_BYTES = 2 << 20
_MIN_LANES = 128
# Keep at least this many grid blocks (when shape allows) so both v7x
# TensorCores get work and the pipeline has depth.
_MIN_BLOCKS = 8
# Row-tile granularity legal for every dtype's sublane packing (f32/bf16/i8).
_ROW_ALIGN = 32


def _round_up(x: int, m: int) -> int:
    return ((x + m - 1) // m) * m


def _round_down(x: int, m: int) -> int:
    return (x // m) * m


def _copy_kernel(x_ref, o_ref):
    # Blocks are identical windows of input and output; the chomp is done by
    # the BlockSpec (the tail is simply never part of the output array).
    o_ref[...] = x_ref[...]


def _pick_tiles(rows: int, l_out: int, itemsize: int):
    """Choose (tr, tl) with tl % 128 == 0 and tr % 32 == 0 (or tr == rows)."""
    l_pad = _round_up(l_out, 128)

    # Prefer a single lane-dense time block per row band if a minimal
    # (32-row) band fits the budget; otherwise cap tl to the budget.
    if _ROW_ALIGN * l_pad * itemsize <= _BLOCK_BYTE_BUDGET:
        tl = l_pad
    else:
        tl = max(128,
                 _round_down(_BLOCK_BYTE_BUDGET // (_ROW_ALIGN * itemsize), 128))
    n_time_blocks = pl.cdiv(l_out, tl)

    # Rows per block: as many as fit the budget...
    tr_budget = max(_ROW_ALIGN,
                    _round_down(_BLOCK_BYTE_BUDGET // (tl * itemsize), _ROW_ALIGN))
    # ...but keep enough total blocks for v7x's two cores / pipelining.
    want_row_blocks = pl.cdiv(_MIN_BLOCKS, n_time_blocks)
    tr_parallel = max(_ROW_ALIGN,
                      _round_up(pl.cdiv(rows, want_row_blocks), _ROW_ALIGN))
    tr = min(tr_budget, tr_parallel)
    if tr >= rows:
        tr = rows  # full row extent is always a legal block dim
    return tr, tl


def chomp1d(x: jax.Array, chomp_size: int) -> jax.Array:
    """Pallas implementation of Chomp1d.forward for x of shape (N, C, L)."""
    if chomp_size == 0:
        return x
    n, c, l = x.shape
    l_out = l - chomp_size
    assert l_out > 0, "chomp_size must be smaller than the time dimension"

    rows = n * c
    itemsize = x.dtype.itemsize

    # Small-problem fallback: launch overhead >> copy cost; the XLA slice
    # also fuses into downstream consumers, making the copy free.
    if l_out < _MIN_LANES or rows * l_out * itemsize < _MIN_OUT_BYTES:
        return x[:, :, :l_out]

    # Flatten (N, C) -> rows; both reshapes are free (contiguous layout).
    x2 = x.reshape(rows, l)

    tr, tl = _pick_tiles(rows, l_out, itemsize)
    grid = (pl.cdiv(rows, tr), pl.cdiv(l_out, tl))

    out = pl.pallas_call(
        _copy_kernel,
        out_shape=jax.ShapeDtypeStruct((rows, l_out), x.dtype),
        grid=grid,
        in_specs=[pl.BlockSpec((tr, tl), lambda r, t: (r, t))],
        out_specs=pl.BlockSpec((tr, tl), lambda r, t: (r, t)),
        compiler_params=pltpu.CompilerParams(
            dimension_semantics=("parallel", "parallel"),
        ),
        cost_estimate=pl.CostEstimate(
            flops=0,
            transcendentals=0,
            bytes_accessed=2 * rows * l_out * itemsize,
        ),
    )(x2)

    return out.reshape(n, c, l_out)


if __name__ == "__main__":
    key = jax.random.PRNGKey(0)
    k1, k2, k3, k4 = jax.random.split(key, 4)

    # 1) Spec-consistent small shape (N=2, C=4, L=16): takes the fast
    #    native-slice fallback path.
    x_small = jax.random.normal(k1, (2, 4, 16), dtype=jnp.float32)
    out_small = jax.block_until_ready(chomp1d(x_small, 4))
    assert out_small.shape == (2, 4, 12), out_small.shape
    assert out_small.dtype == x_small.dtype
    assert jnp.array_equal(out_small, x_small[:, :, :12])

    # chomp_size == 0 identity path.
    out0 = jax.block_until_ready(chomp1d(x_small, 0))
    assert jnp.array_equal(out0, x_small)

    # 2) Pallas path, l_out an exact multiple of 128 (single lane-dense
    #    time block, multiple row blocks for the two-TC grid guard).
    x_aligned = jax.random.normal(k2, (4, 128, 1200), dtype=jnp.float32)
    out_a = jax.block_until_ready(chomp1d(x_aligned, 48))
    assert out_a.shape == (4, 128, 1152), out_a.shape
    assert jnp.array_equal(out_a, x_aligned[:, :, :1152])

    # 3) Pallas path with a ragged time tail: the single time block is
    #    rounded up to 128 lanes, overhangs past the input on the read side,
    #    and the out-of-bounds part of the write is dropped.
    x_ragged = jax.random.normal(k3, (4, 128, 1100), dtype=jnp.float32)
    out_b = jax.block_until_ready(chomp1d(x_ragged, 36))
    assert out_b.shape == (4, 128, 1064), out_b.shape
    assert jnp.array_equal(out_b, x_ragged[:, :, :1064])

    # 4) Pallas path, long time axis forcing multiple time blocks.
    x_long = jax.random.normal(k4, (2, 32, 20000), dtype=jnp.float32)
    out_c = jax.block_until_ready(chomp1d(x_long, 64))
    assert out_c.shape == (2, 32, 19936), out_c.shape
    assert jnp.array_equal(out_c, x_long[:, :, :19936])

    print("KERNEL_OK")
</pallas_src>

<mosaic_0001>
module attributes {stable_mosaic.version = 11 : i64} {
  func.func @_copy_kernel(%arg0: i32, %arg1: i32, %arg2: memref<64x1152xf32, #tpu.memory_space<vmem>>, %arg3: memref<64x1152xf32, #tpu.memory_space<vmem>>) attributes {dimension_semantics = [#tpu.dimension_semantics<parallel>, #tpu.dimension_semantics<parallel>], iteration_bounds = array<i64: 8, 1>, scalar_prefetch = 0 : i64, scratch_operands = 0 : i64, tpu.core_type = #tpu.core_type<tc>, window_params = [{transform_indices = @transform_0, window_bounds = array<i64: 64, 1152>}, {transform_indices = @transform_1, window_bounds = array<i64: 64, 1152>}]} {
    %c0 = arith.constant 0 : index
    %c0_0 = arith.constant 0 : index
    %0 = vector.load %arg2[%c0, %c0_0] : memref<64x1152xf32, #tpu.memory_space<vmem>>, vector<64x1152xf32>
    %c0_1 = arith.constant 0 : index
    %c0_2 = arith.constant 0 : index
    %1 = vector.load %arg3[%c0_1, %c0_2] : memref<64x1152xf32, #tpu.memory_space<vmem>>, vector<64x1152xf32>
    tpu.vector_store %arg3[%c0_1, %c0_2], %0 {strides = array<i32>} : memref<64x1152xf32, #tpu.memory_space<vmem>>, vector<64x1152xf32>,
    return
  }
  func.func @transform_0(%arg0: i32, %arg1: i32) -> (i32, i32) {
    %c0_i32 = arith.constant 0 : i32
    return %arg0, %arg1 : i32, i32
  }
  func.func @transform_1(%arg0: i32, %arg1: i32) -> (i32, i32) {
    %c0_i32 = arith.constant 0 : i32
    return %arg0, %arg1 : i32, i32
  }
}

</mosaic_0001>

<llo_original>
// kernel: tpu_custom_call.1
$region0: #{tpu_custom_call.1}
  #allocation0 [shape = 'u32[]', space=smem, size = 0x4, offset = 0x4, fixed_abs, tag = 'smem constant byte address 0x4 - core index']
  #allocation1 [shape = 'u32[144,128]{1,0:T(1,128)}', space=vmem, size = 0x12000, scoped, tag = 'internal scratch']
  %s0 = inlined_call_operand.vmem [shape: f32[512,1200], index: 0, kind: input, shape index: {}]
  %s1 = inlined_call_operand.hbm [shape: f32[512,1152], index: 1, kind: output, shape index: {}]
  %s2 = sld [smem:[#allocation0]]
  $region103: #{tpu_custom_call.1} parent=0
    _
  %s4 = ssub.s32 1, %s2
  %s5 = scalar_select 0, %s4, %s2
  $region1: #{tpu_custom_call.1} parent=0
    #allocation2 [shape = 'u8[589824]{0}', space=vmem, size = 0x90000, scoped, tag = 'input window, operand 0']
    #allocation3 [shape = 'u8[589824]{0}', space=vmem, size = 0x90000, scoped, tag = 'output window, operand 0']
    #allocation4 [shape = 's32[2]{0}', space=sflag, size = 0x8, scoped, tag = 'scoped memory for tpu_custom_call.1']
    %6 = vsyncpa [#allocation4], 0
    %s7 = scalar_lea.sflag [#allocation4], 1
    %8 = vsyncpa %s7, 0
    loop: start=0, step=1, limit=10
    $region2: #{tpu_custom_call.1} parent=1 // loop_pre_header
      _
    $region3: #{tpu_custom_call.1} parent=1 // loop_header
      %s10 = sphi 0, %s14
      %p11 = scmp.ge.s32.totalorder %s10, 10
      %s17 = sphi 0, %s29
      %s18 = sphi 0, %s25
      %s19 = sphi 0, %s17
      %s20 = sphi 0, %s18
      %s21 = sphi 0, %s19
      %s22 = sphi 0, %s20
      %s34 = sphi 0, %s36
      %s37 = sphi 0, %s34
      %s38 = sphi 0, %s37
      %s54 = sphi 0, %s38
      %s62 = sphi 0, %s64
      %s65 = sphi 0, %s62
      %s66 = sphi 0, %s65
      %s82 = sphi 0, %s66
    $region4: #{tpu_custom_call.1} parent=1 // loop_header_branch
      %13 = sbr.rel (%p11) target = $region8
    $region5: #{tpu_custom_call.1} parent=1 // loop_body
      %s15 = ssub.s32 %s10, 1
      %s16 = ssub.s32 %s10, 2
      %s23 = sadd.s32 1, %s18
      %p24 = scmp.ge.s32.totalorder %s23, 1
      %s25 = scalar_select %p24, 0, %s23
      %s26 = sadd.s32 1, %s17
      %s27 = scalar_select %p24, %s26, %s17
      %p28 = scmp.ge.s32.totalorder %s27, 8
      %s29 = scalar_select %p28, 0, %s27
      %s30 = ssub.s32 %s17, %s29
      %s31 = ssub.s32 %s18, %s25
      %s32 = sor.u32 %s30, %s31
      %p33 = scmp.eq.s32.totalorder %s32, 0
      %s35 = sadd.s32 %s34, 1
      %s36 = scalar_select %p33, %s34, %s35
      %p39 = pneg %p33
      %p40 = scmp.eq.s32.totalorder %s10, 7
      %p41 = por %p39, %p40
      %p42 = scmp.ne.s32.totalorder %s34, %s37
      %p43 = scmp.eq.s32.totalorder %s10, 0
      %p44 = por %p42, %p43
      %p45 = scmp.ne.s32.totalorder %s34, %s37
      %p46 = scmp.eq.s32.totalorder %s15, 7
      %p47 = por %p45, %p46
      %p48 = scmp.ne.s32.totalorder %s37, %s38
      %p49 = scmp.eq.s32.totalorder %s15, 0
      %p50 = por %p48, %p49
      %p51 = scmp.ne.s32.totalorder %s37, %s38
      %p52 = scmp.eq.s32.totalorder %s16, 7
      %p53 = por %p51, %p52
      %p55 = scmp.ne.s32.totalorder %s38, %s54
      %p56 = scmp.eq.s32.totalorder %s16, 0
      %p57 = por %p55, %p56
      %s58 = ssub.s32 %s17, %s29
      %s59 = ssub.s32 %s18, %s25
      %s60 = sor.u32 %s58, %s59
      %p61 = scmp.eq.s32.totalorder %s60, 0
      %s63 = sadd.s32 %s62, 1
      %s64 = scalar_select %p61, %s62, %s63
      %p67 = pneg %p61
      %p68 = scmp.eq.s32.totalorder %s10, 7
      %p69 = por %p67, %p68
      %p70 = scmp.ne.s32.totalorder %s62, %s65
      %p71 = scmp.eq.s32.totalorder %s10, 0
      %p72 = por %p70, %p71
      %p73 = scmp.ne.s32.totalorder %s62, %s65
      %p74 = scmp.eq.s32.totalorder %s15, 7
      %p75 = por %p73, %p74
      %p76 = scmp.ne.s32.totalorder %s65, %s66
      %p77 = scmp.eq.s32.totalorder %s15, 0
      %p78 = por %p76, %p77
      %p79 = scmp.ne.s32.totalorder %s65, %s66
      %p80 = scmp.eq.s32.totalorder %s16, 7
      %p81 = por %p79, %p80
      %p83 = scmp.ne.s32.totalorder %s66, %s82
      %p84 = scmp.eq.s32.totalorder %s16, 0
      %p85 = por %p83, %p84
      %p86 = scmp.le.s32.totalorder 1, %s10
      %p87 = scmp.lt.s32.totalorder %s10, 9
      %p88 = pnand %p86, %p87
      %p89 = pneg %p88
      // Predicated region
      $region9: #{tpu_custom_call.1} parent=5 // pred_check
        _
      $region10: #{tpu_custom_call.1} parent=5 // pred_check_branch
        %91 = sbr.rel (%p88) target = $region12
      $region11: #{tpu_custom_call.1} parent=5 // pred_region
        %s92 = ssub.s32 %s10, 1
      $region12: #{tpu_custom_call.1} parent=5 // pred_fallthru
        _
      %p93 = scmp.lt.s32.totalorder %s10, 8
      // Predicated region
      $region13: #{tpu_custom_call.1} parent=5 // pred_check
        %p94 = pneg %p93
      $region14: #{tpu_custom_call.1} parent=5 // pred_check_branch
        %96 = sbr.rel (%p94) target = $region16
      $region15: #{tpu_custom_call.1} parent=5 // pred_region
        // Predicated region
        $region17: #{tpu_custom_call.1} parent=15 // pred_check
          %p97 = pneg %p44
        $region18: #{tpu_custom_call.1} parent=15 // pred_check_branch
          %99 = sbr.rel (%p97) target = $region20
        $region19: #{tpu_custom_call.1} parent=15 // pred_region
          %s100 = sand.u32 %s34, 1
          %s101 = sand.u32 %s34, 1
          %s102 = smul.addr %s101, 576
          %s103 = scalar_lea.vmem [#allocation2], %s102
          %s104 = smul.u32 8, %s17
          %s105 = smul.u32 9, %s18
          %s106 = ssub.s32 10, %s105
          %p107 = scmp.lt.s32.totalorder %s106, 9
          %s108 = scalar_select %p107, %s106, 9
          %s109 = smul.u32 1024, %s108
          %p110 = scmp.ne.s32.totalorder 0, %s109
          %s111 = smul.addr %s104, 10
          %s112 = sadd.s32 %s105, %s111
          %s113 = smul.addr %s112, 8
          %s114 = scalar_lea.vmem %s0, %s113
          %s115 = smul.u32 %s108, 8
          // Predicated region
          $region21: #{tpu_custom_call.1} parent=19 // pred_check
            %p116 = pneg %p110
          $region22: #{tpu_custom_call.1} parent=19 // pred_check_branch
            %118 = sbr.rel (%p116) target = $region24
          $region23: #{tpu_custom_call.1} parent=19 // pred_region
            %p119 = scmp.lt.u32.totalorder %s115, 8
            %p120 = pneg %p119
            // Predicated region
            $region25: #{tpu_custom_call.1} parent=23 // pred_check
              _
            $region26: #{tpu_custom_call.1} parent=23 // pred_check_branch
              %122 = sbr.rel (%p119) target = $region28
            $region27: #{tpu_custom_call.1} parent=23 // pred_region
              %s151 = sand.u32 %s115, 7
              %p152 = scmp.eq.s32.totalorder %s151, 0
              // Predicated region
              $region40: #{tpu_custom_call.1} parent=27 // pred_check
                %p153 = pneg %p152
              $region41: #{tpu_custom_call.1} parent=27 // pred_check_branch
                %155 = sbr.rel (%p153) target = $region43
              $region42: #{tpu_custom_call.1} parent=27 // pred_region
                %s156 = sshrl.u32 %s115, 3
                %s157 = sshrl.u32 %s156, 3
                // While loop
                $region44: #{tpu_custom_call.1} parent=42 // loop_pre_header
                  _
                $region45: #{tpu_custom_call.1} parent=42 // loop_header
                  %s161 = sphi 0, %s163
                  %p162 = scmp.ge.s32.totalorder %s161, %s157
                  %s166 = sphi 0, %s299
                  %s167 = sphi %s114, %s302
                  %s168 = sphi %s103, %s303
                $region46: #{tpu_custom_call.1} parent=42 // loop_header_branch
                  %165 = sbr.rel (%p162) target = $region50
                $region47: #{tpu_custom_call.1} parent=42 // loop_body
                  %v169 = vld [vmem:[%s167] sm:$0xff]
                  %170 = vst [vmem:[%s168] sm:$0xff] %v169
                  %v171 = vld [vmem:[%s167 + $0x8] sm:$0xff]
                  %172 = vst [vmem:[%s168 + $0x8] sm:$0xff] %v171
                  %v173 = vld [vmem:[%s167 + $0x10] sm:$0xff]
                  %174 = vst [vmem:[%s168 + $0x10] sm:$0xff] %v173
                  %v175 = vld [vmem:[%s167 + $0x18] sm:$0xff]
                  %176 = vst [vmem:[%s168 + $0x18] sm:$0xff] %v175
                  %v177 = vld [vmem:[%s167 + $0x20] sm:$0xff]
                  %178 = vst [vmem:[%s168 + $0x20] sm:$0xff] %v177
                  %v179 = vld [vmem:[%s167 + $0x28] sm:$0xff]
                  %180 = vst [vmem:[%s168 + $0x28] sm:$0xff] %v179
                  %v181 = vld [vmem:[%s167 + $0x30] sm:$0xff]
                  %182 = vst [vmem:[%s168 + $0x30] sm:$0xff] %v181
                  %v183 = vld [vmem:[%s167 + $0x38] sm:$0xff]
                  %184 = vst [vmem:[%s168 + $0x38] sm:$0xff] %v183
                  %v185 = vld [vmem:[%s167 + $0x50] sm:$0xff]
                  %186 = vst [vmem:[%s168 + $0x48] sm:$0xff] %v185
                  %v187 = vld [vmem:[%s167 + $0x58] sm:$0xff]
                  %188 = vst [vmem:[%s168 + $0x50] sm:$0xff] %v187
                  %v189 = vld [vmem:[%s167 + $0x60] sm:$0xff]
                  %190 = vst [vmem:[%s168 + $0x58] sm:$0xff] %v189
                  %v191 = vld [vmem:[%s167 + $0x68] sm:$0xff]
                  %192 = vst [vmem:[%s168 + $0x60] sm:$0xff] %v191
                  %v193 = vld [vmem:[%s167 + $0x70] sm:$0xff]
                  %194 = vst [vmem:[%s168 + $0x68] sm:$0xff] %v193
                  %v195 = vld [vmem:[%s167 + $0x78] sm:$0xff]
                  %196 = vst [vmem:[%s168 + $0x70] sm:$0xff] %v195
                  %v197 = vld [vmem:[%s167 + $0x80] sm:$0xff]
                  %198 = vst [vmem:[%s168 + $0x78] sm:$0xff] %v197
                  %v199 = vld [vmem:[%s167 + $0x88] sm:$0xff]
                  %200 = vst [vmem:[%s168 + $0x80] sm:$0xff] %v199
                  %v201 = vld [vmem:[%s167 + $0xa0] sm:$0xff]
                  %202 = vst [vmem:[%s168 + $0x90] sm:$0xff] %v201
                  %v203 = vld [vmem:[%s167 + $0xa8] sm:$0xff]
                  %204 = vst [vmem:[%s168 + $0x98] sm:$0xff] %v203
                  %v205 = vld [vmem:[%s167 + $0xb0] sm:$0xff]
                  %206 = vst [vmem:[%s168 + $0xa0] sm:$0xff] %v205
                  %v207 = vld [vmem:[%s167 + $0xb8] sm:$0xff]
                  %208 = vst [vmem:[%s168 + $0xa8] sm:$0xff] %v207
                  %v209 = vld [vmem:[%s167 + $0xc0] sm:$0xff]
                  %210 = vst [vmem:[%s168 + $0xb0] sm:$0xff] %v209
                  %v211 = vld [vmem:[%s167 + $0xc8] sm:$0xff]
                  %212 = vst [vmem:[%s168 + $0xb8] sm:$0xff] %v211
                  %v213 = vld [vmem:[%s167 + $0xd0] sm:$0xff]
                  %214 = vst [vmem:[%s168 + $0xc0] sm:$0xff] %v213
                  %v215 = vld [vmem:[%s167 + $0xd8] sm:$0xff]
                  %216 = vst [vmem:[%s168 + $0xc8] sm:$0xff] %v215
                  %v217 = vld [vmem:[%s167 + $0xf0] sm:$0xff]
                  %218 = vst [vmem:[%s168 + $0xd8] sm:$0xff] %v217
                  %v219 = vld [vmem:[%s167 + $0xf8] sm:$0xff]
                  %220 = vst [vmem:[%s168 + $0xe0] sm:$0xff] %v219
                  %v221 = vld [vmem:[%s167 + $0x100] sm:$0xff]
                  %222 = vst [vmem:[%s168 + $0xe8] sm:$0xff] %v221
                  %v223 = vld [vmem:[%s167 + $0x108] sm:$0xff]
                  %224 = vst [vmem:[%s168 + $0xf0] sm:$0xff] %v223
                  %v225 = vld [vmem:[%s167 + $0x110] sm:$0xff]
                  %226 = vst [vmem:[%s168 + $0xf8] sm:$0xff] %v225
                  %v227 = vld [vmem:[%s167 + $0x118] sm:$0xff]
                  %228 = vst [vmem:[%s168 + $0x100] sm:$0xff] %v227
                  %v229 = vld [vmem:[%s167 + $0x120] sm:$0xff]
                  %230 = vst [vmem:[%s168 + $0x108] sm:$0xff] %v229
                  %v231 = vld [vmem:[%s167 + $0x128] sm:$0xff]
                  %232 = vst [vmem:[%s168 + $0x110] sm:$0xff] %v231
                  %v233 = vld [vmem:[%s167 + $0x140] sm:$0xff]
                  %234 = vst [vmem:[%s168 + $0x120] sm:$0xff] %v233
                  %v235 = vld [vmem:[%s167 + $0x148] sm:$0xff]
                  %236 = vst [vmem:[%s168 + $0x128] sm:$0xff] %v235
                  %v237 = vld [vmem:[%s167 + $0x150] sm:$0xff]
                  %238 = vst [vmem:[%s168 + $0x130] sm:$0xff] %v237
                  %v239 = vld [vmem:[%s167 + $0x158] sm:$0xff]
                  %240 = vst [vmem:[%s168 + $0x138] sm:$0xff] %v239
                  %v241 = vld [vmem:[%s167 + $0x160] sm:$0xff]
                  %242 = vst [vmem:[%s168 + $0x140] sm:$0xff] %v241
                  %v243 = vld [vmem:[%s167 + $0x168] sm:$0xff]
                  %244 = vst [vmem:[%s168 + $0x148] sm:$0xff] %v243
                  %v245 = vld [vmem:[%s167 + $0x170] sm:$0xff]
                  %246 = vst [vmem:[%s168 + $0x150] sm:$0xff] %v245
                  %v247 = vld [vmem:[%s167 + $0x178] sm:$0xff]
                  %248 = vst [vmem:[%s168 + $0x158] sm:$0xff] %v247
                  %v249 = vld [vmem:[%s167 + $0x190] sm:$0xff]
                  %250 = vst [vmem:[%s168 + $0x168] sm:$0xff] %v249
                  %v251 = vld [vmem:[%s167 + $0x198] sm:$0xff]
                  %252 = vst [vmem:[%s168 + $0x170] sm:$0xff] %v251
                  %v253 = vld [vmem:[%s167 + $0x1a0] sm:$0xff]
                  %254 = vst [vmem:[%s168 + $0x178] sm:$0xff] %v253
                  %v255 = vld [vmem:[%s167 + $0x1a8] sm:$0xff]
                  %256 = vst [vmem:[%s168 + $0x180] sm:$0xff] %v255
                  %v257 = vld [vmem:[%s167 + $0x1b0] sm:$0xff]
                  %258 = vst [vmem:[%s168 + $0x188] sm:$0xff] %v257
                  %v259 = vld [vmem:[%s167 + $0x1b8] sm:$0xff]
                  %260 = vst [vmem:[%s168 + $0x190] sm:$0xff] %v259
                  %v261 = vld [vmem:[%s167 + $0x1c0] sm:$0xff]
                  %262 = vst [vmem:[%s168 + $0x198] sm:$0xff] %v261
                  %v263 = vld [vmem:[%s167 + $0x1c8] sm:$0xff]
                  %264 = vst [vmem:[%s168 + $0x1a0] sm:$0xff] %v263
                  %v265 = vld [vmem:[%s167 + $0x1e0] sm:$0xff]
                  %266 = vst [vmem:[%s168 + $0x1b0] sm:$0xff] %v265
                  %v267 = vld [vmem:[%s167 + $0x1e8] sm:$0xff]
                  %268 = vst [vmem:[%s168 + $0x1b8] sm:$0xff] %v267
                  %v269 = vld [vmem:[%s167 + $0x1f0] sm:$0xff]
                  %270 = vst [vmem:[%s168 + $0x1c0] sm:$0xff] %v269
                  %v271 = vld [vmem:[%s167 + $0x1f8] sm:$0xff]
                  %272 = vst [vmem:[%s168 + $0x1c8] sm:$0xff] %v271
                  %v273 = vld [vmem:[%s167 + $0x200] sm:$0xff]
                  %274 = vst [vmem:[%s168 + $0x1d0] sm:$0xff] %v273
                  %v275 = vld [vmem:[%s167 + $0x208] sm:$0xff]
                  %276 = vst [vmem:[%s168 + $0x1d8] sm:$0xff] %v275
                  %v277 = vld [vmem:[%s167 + $0x210] sm:$0xff]
                  %278 = vst [vmem:[%s168 + $0x1e0] sm:$0xff] %v277
                  %v279 = vld [vmem:[%s167 + $0x218] sm:$0xff]
                  %280 = vst [vmem:[%s168 + $0x1e8] sm:$0xff] %v279
                  %v281 = vld [vmem:[%s167 + $0x230] sm:$0xff]
                  %282 = vst [vmem:[%s168 + $0x1f8] sm:$0xff] %v281
                  %v283 = vld [vmem:[%s167 + $0x238] sm:$0xff]
                  %284 = vst [vmem:[%s168 + $0x200] sm:$0xff] %v283
                  %v285 = vld [vmem:[%s167 + $0x240] sm:$0xff]
                  %286 = vst [vmem:[%s168 + $0x208] sm:$0xff] %v285
                  %v287 = vld [vmem:[%s167 + $0x248] sm:$0xff]
                  %288 = vst [vmem:[%s168 + $0x210] sm:$0xff] %v287
                  %v289 = vld [vmem:[%s167 + $0x250] sm:$0xff]
                  %290 = vst [vmem:[%s168 + $0x218] sm:$0xff] %v289
                  %v291 = vld [vmem:[%s167 + $0x258] sm:$0xff]
                  %292 = vst [vmem:[%s168 + $0x220] sm:$0xff] %v291
                  %v293 = vld [vmem:[%s167 + $0x260] sm:$0xff]
                  %294 = vst [vmem:[%s168 + $0x228] sm:$0xff] %v293
                  %v295 = vld [vmem:[%s167 + $0x268] sm:$0xff]
                  %296 = vst [vmem:[%s168 + $0x230] sm:$0xff] %v295
                  %s297 = sadd.s32 1, %s166
                  %p298 = scmp.ge.s32.totalorder %s297, %s157
                  %s299 = scalar_select %p298, 0, %s297
                  %s300 = smul.u32 %s299, 64
                  %s301 = smul.u32 %s299, 64
                  %s302 = scalar_lea.vmem %s114, %s300
                  %s303 = scalar_lea.vmem %s103, %s301 [#allocation2]
                $region48: #{tpu_custom_call.1} parent=42 // loop_footer
                  %s163 = sadd.s32 %s161, 1
                $region49: #{tpu_custom_call.1} parent=42 // loop_footer_branch
                  %160 = sbr.rel target = $region45
                $region50: #{tpu_custom_call.1} parent=42 // loop_exit
                  _
                %s304 = sshrl.u32 %s156, 3
                %s305 = sand.u32 %s156, 7
                %s306 = smul.u32 %s304, 8
                %s307 = smul.u32 128, %s306
                %s308 = sshra.s32 %s307, 4
                %s309 = scalar_lea.vmem %s114, %s308
                %s310 = smul.u32 128, %s306
                %s311 = sshra.s32 %s310, 4
                %s312 = scalar_lea.vmem %s103, %s311 [#allocation2]
                // While loop
                $region51: #{tpu_custom_call.1} parent=42 // loop_pre_header
                  _
                $region52: #{tpu_custom_call.1} parent=42 // loop_header
                  %s316 = sphi 0, %s318
                  %p317 = scmp.ge.s32.totalorder %s316, %s305
                  %s321 = sphi 0, %s342
                  %s322 = sphi %s309, %s345
                  %s323 = sphi %s312, %s346
                $region53: #{tpu_custom_call.1} parent=42 // loop_header_branch
                  %320 = sbr.rel (%p317) target = $region57
                $region54: #{tpu_custom_call.1} parent=42 // loop_body
                  %v324 = vld [vmem:[%s322] sm:$0xff]
                  %325 = vst [vmem:[%s323] sm:$0xff] %v324
                  %v326 = vld [vmem:[%s322 + $0x50] sm:$0xff]
                  %327 = vst [vmem:[%s323 + $0x48] sm:$0xff] %v326
                  %v328 = vld [vmem:[%s322 + $0xa0] sm:$0xff]
                  %329 = vst [vmem:[%s323 + $0x90] sm:$0xff] %v328
                  %v330 = vld [vmem:[%s322 + $0xf0] sm:$0xff]
                  %331 = vst [vmem:[%s323 + $0xd8] sm:$0xff] %v330
                  %v332 = vld [vmem:[%s322 + $0x140] sm:$0xff]
                  %333 = vst [vmem:[%s323 + $0x120] sm:$0xff] %v332
                  %v334 = vld [vmem:[%s322 + $0x190] sm:$0xff]
                  %335 = vst [vmem:[%s323 + $0x168] sm:$0xff] %v334
                  %v336 = vld [vmem:[%s322 + $0x1e0] sm:$0xff]
                  %337 = vst [vmem:[%s323 + $0x1b0] sm:$0xff] %v336
                  %v338 = vld [vmem:[%s322 + $0x230] sm:$0xff]
                  %339 = vst [vmem:[%s323 + $0x1f8] sm:$0xff] %v338
                  %s340 = sadd.s32 1, %s321
                  %p341 = scmp.ge.s32.totalorder %s340, %s305
                  %s342 = scalar_select %p341, 0, %s340
                  %s343 = smul.u32 %s342, 8
                  %s344 = smul.u32 %s342, 8
                  %s345 = scalar_lea.vmem %s309, %s343
                  %s346 = scalar_lea.vmem %s312, %s344 [#allocation2]
                $region55: #{tpu_custom_call.1} parent=42 // loop_footer
                  %s318 = sadd.s32 %s316, 1
                $region56: #{tpu_custom_call.1} parent=42 // loop_footer_branch
                  %315 = sbr.rel target = $region52
                $region57: #{tpu_custom_call.1} parent=42 // loop_exit
                  _
              $region43: #{tpu_custom_call.1} parent=27 // pred_fallthru
                _
              %p347 = pneg %p152
              // Predicated region
              $region58: #{tpu_custom_call.1} parent=27 // pred_check
                _
              $region59: #{tpu_custom_call.1} parent=27 // pred_check_branch
                %349 = sbr.rel (%p152) target = $region61
              $region60: #{tpu_custom_call.1} parent=27 // pred_region
                %s350 = sand.u32 %s115, 7
                %s351 = ssub.s32 %s115, %s350
                %s352 = scalar_lea.vmem %s114, %s351
                %s353 = ssub.s32 %s115, %s350
                %s354 = scalar_lea.vmem %s103, %s353 [#allocation2]
                %s355 = sshrl.u32 %s115, 3
                %s356 = sshrl.u32 %s355, 3
                // While loop
                $region62: #{tpu_custom_call.1} parent=60 // loop_pre_header
                  _
                $region63: #{tpu_custom_call.1} parent=60 // loop_header
                  %s360 = sphi 0, %s362
                  %p361 = scmp.ge.s32.totalorder %s360, %s356
                  %s365 = sphi 0, %s498
                  %s366 = sphi %s114, %s501
                  %s367 = sphi %s103, %s502
                $region64: #{tpu_custom_call.1} parent=60 // loop_header_branch
                  %364 = sbr.rel (%p361) target = $region68
                $region65: #{tpu_custom_call.1} parent=60 // loop_body
                  %v368 = vld [vmem:[%s366] sm:$0xff]
                  %369 = vst [vmem:[%s367] sm:$0xff] %v368
                  %v370 = vld [vmem:[%s366 + $0x8] sm:$0xff]
                  %371 = vst [vmem:[%s367 + $0x8] sm:$0xff] %v370
                  %v372 = vld [vmem:[%s366 + $0x10] sm:$0xff]
                  %373 = vst [vmem:[%s367 + $0x10] sm:$0xff] %v372
                  %v374 = vld [vmem:[%s366 + $0x18] sm:$0xff]
                  %375 = vst [vmem:[%s367 + $0x18] sm:$0xff] %v374
                  %v376 = vld [vmem:[%s366 + $0x20] sm:$0xff]
                  %377 = vst [vmem:[%s367 + $0x20] sm:$0xff] %v376
                  %v378 = vld [vmem:[%s366 + $0x28] sm:$0xff]
                  %379 = vst [vmem:[%s367 + $0x28] sm:$0xff] %v378
                  %v380 = vld [vmem:[%s366 + $0x30] sm:$0xff]
                  %381 = vst [vmem:[%s367 + $0x30] sm:$0xff] %v380
                  %v382 = vld [vmem:[%s366 + $0x38] sm:$0xff]
                  %383 = vst [vmem:[%s367 + $0x38] sm:$0xff] %v382
                  %v384 = vld [vmem:[%s366 + $0x50] sm:$0xff]
                  %385 = vst [vmem:[%s367 + $0x48] sm:$0xff] %v384
                  %v386 = vld [vmem:[%s366 + $0x58] sm:$0xff]
                  %387 = vst [vmem:[%s367 + $0x50] sm:$0xff] %v386
                  %v388 = vld [vmem:[%s366 + $0x60] sm:$0xff]
                  %389 = vst [vmem:[%s367 + $0x58] sm:$0xff] %v388
                  %v390 = vld [vmem:[%s366 + $0x68] sm:$0xff]
                  %391 = vst [vmem:[%s367 + $0x60] sm:$0xff] %v390
                  %v392 = vld [vmem:[%s366 + $0x70] sm:$0xff]
                  %393 = vst [vmem:[%s367 + $0x68] sm:$0xff] %v392
                  %v394 = vld [vmem:[%s366 + $0x78] sm:$0xff]
                  %395 = vst [vmem:[%s367 + $0x70] sm:$0xff] %v394
                  %v396 = vld [vmem:[%s366 + $0x80] sm:$0xff]
                  %397 = vst [vmem:[%s367 + $0x78] sm:$0xff] %v396
                  %v398 = vld [vmem:[%s366 + $0x88] sm:$0xff]
                  %399 = vst [vmem:[%s367 + $0x80] sm:$0xff] %v398
                  %v400 = vld [vmem:[%s366 + $0xa0] sm:$0xff]
                  %401 = vst [vmem:[%s367 + $0x90] sm:$0xff] %v400
                  %v402 = vld [vmem:[%s366 + $0xa8] sm:$0xff]
                  %403 = vst [vmem:[%s367 + $0x98] sm:$0xff] %v402
                  %v404 = vld [vmem:[%s366 + $0xb0] sm:$0xff]
                  %405 = vst [vmem:[%s367 + $0xa0] sm:$0xff] %v404
                  %v406 = vld [vmem:[%s366 + $0xb8] sm:$0xff]
                  %407 = vst [vmem:[%s367 + $0xa8] sm:$0xff] %v406
                  %v408 = vld [vmem:[%s366 + $0xc0] sm:$0xff]
                  %409 = vst [vmem:[%s367 + $0xb0] sm:$0xff] %v408
                  %v410 = vld [vmem:[%s366 + $0xc8] sm:$0xff]
                  %411 = vst [vmem:[%s367 + $0xb8] sm:$0xff] %v410
                  %v412 = vld [vmem:[%s366 + $0xd0] sm:$0xff]
                  %413 = vst [vmem:[%s367 + $0xc0] sm:$0xff] %v412
                  %v414 = vld [vmem:[%s366 + $0xd8] sm:$0xff]
                  %415 = vst [vmem:[%s367 + $0xc8] sm:$0xff] %v414
                  %v416 = vld [vmem:[%s366 + $0xf0] sm:$0xff]
                  %417 = vst [vmem:[%s367 + $0xd8] sm:$0xff] %v416
                  %v418 = vld [vmem:[%s366 + $0xf8] sm:$0xff]
                  %419 = vst [vmem:[%s367 + $0xe0] sm:$0xff] %v418
                  %v420 = vld [vmem:[%s366 + $0x100] sm:$0xff]
                  %421 = vst [vmem:[%s367 + $0xe8] sm:$0xff] %v420
                  %v422 = vld [vmem:[%s366 + $0x108] sm:$0xff]
                  %423 = vst [vmem:[%s367 + $0xf0] sm:$0xff] %v422
                  %v424 = vld [vmem:[%s366 + $0x110] sm:$0xff]
                  %425 = vst [vmem:[%s367 + $0xf8] sm:$0xff] %v424
                  %v426 = vld [vmem:[%s366 + $0x118] sm:$0xff]
                  %427 = vst [vmem:[%s367 + $0x100] sm:$0xff] %v426
                  %v428 = vld [vmem:[%s366 + $0x120] sm:$0xff]
                  %429 = vst [vmem:[%s367 + $0x108] sm:$0xff] %v428
                  %v430 = vld [vmem:[%s366 + $0x128] sm:$0xff]
                  %431 = vst [vmem:[%s367 + $0x110] sm:$0xff] %v430
                  %v432 = vld [vmem:[%s366 + $0x140] sm:$0xff]
                  %433 = vst [vmem:[%s367 + $0x120] sm:$0xff] %v432
                  %v434 = vld [vmem:[%s366 + $0x148] sm:$0xff]
                  %435 = vst [vmem:[%s367 + $0x128] sm:$0xff] %v434
                  %v436 = vld [vmem:[%s366 + $0x150] sm:$0xff]
                  %437 = vst [vmem:[%s367 + $0x130] sm:$0xff] %v436
                  %v438 = vld [vmem:[%s366 + $0x158] sm:$0xff]
                  %439 = vst [vmem:[%s367 + $0x138] sm:$0xff] %v438
                  %v440 = vld [vmem:[%s366 + $0x160] sm:$0xff]
                  %441 = vst [vmem:[%s367 + $0x140] sm:$0xff] %v440
                  %v442 = vld [vmem:[%s366 + $0x168] sm:$0xff]
                  %443 = vst [vmem:[%s367 + $0x148] sm:$0xff] %v442
                  %v444 = vld [vmem:[%s366 + $0x170] sm:$0xff]
                  %445 = vst [vmem:[%s367 + $0x150] sm:$0xff] %v444
                  %v446 = vld [vmem:[%s366 + $0x178] sm:$0xff]
                  %447 = vst [vmem:[%s367 + $0x158] sm:$0xff] %v446
                  %v448 = vld [vmem:[%s366 + $0x190] sm:$0xff]
                  %449 = vst [vmem:[%s367 + $0x168] sm:$0xff] %v448
                  %v450 = vld [vmem:[%s366 + $0x198] sm:$0xff]
                  %451 = vst [vmem:[%s367 + $0x170] sm:$0xff] %v450
                  %v452 = vld [vmem:[%s366 + $0x1a0] sm:$0xff]
                  %453 = vst [vmem:[%s367 + $0x178] sm:$0xff] %v452
                  %v454 = vld [vmem:[%s366 + $0x1a8] sm:$0xff]
                  %455 = vst [vmem:[%s367 + $0x180] sm:$0xff] %v454
                  %v456 = vld [vmem:[%s366 + $0x1b0] sm:$0xff]
                  %457 = vst [vmem:[%s367 + $0x188] sm:$0xff] %v456
                  %v458 = vld [vmem:[%s366 + $0x1b8] sm:$0xff]
                  %459 = vst [vmem:[%s367 + $0x190] sm:$0xff] %v458
                  %v460 = vld [vmem:[%s366 + $0x1c0] sm:$0xff]
                  %461 = vst [vmem:[%s367 + $0x198] sm:$0xff] %v460
                  %v462 = vld [vmem:[%s366 + $0x1c8] sm:$0xff]
                  %463 = vst [vmem:[%s367 + $0x1a0] sm:$0xff] %v462
                  %v464 = vld [vmem:[%s366 + $0x1e0] sm:$0xff]
                  %465 = vst [vmem:[%s367 + $0x1b0] sm:$0xff] %v464
                  %v466 = vld [vmem:[%s366 + $0x1e8] sm:$0xff]
                  %467 = vst [vmem:[%s367 + $0x1b8] sm:$0xff] %v466
                  %v468 = vld [vmem:[%s366 + $0x1f0] sm:$0xff]
                  %469 = vst [vmem:[%s367 + $0x1c0] sm:$0xff] %v468
                  %v470 = vld [vmem:[%s366 + $0x1f8] sm:$0xff]
                  %471 = vst [vmem:[%s367 + $0x1c8] sm:$0xff] %v470
                  %v472 = vld [vmem:[%s366 + $0x200] sm:$0xff]
                  %473 = vst [vmem:[%s367 + $0x1d0] sm:$0xff] %v472
                  %v474 = vld [vmem:[%s366 + $0x208] sm:$0xff]
                  %475 = vst [vmem:[%s367 + $0x1d8] sm:$0xff] %v474
                  %v476 = vld [vmem:[%s366 + $0x210] sm:$0xff]
                  %477 = vst [vmem:[%s367 + $0x1e0] sm:$0xff] %v476
                  %v478 = vld [vmem:[%s366 + $0x218] sm:$0xff]
                  %479 = vst [vmem:[%s367 + $0x1e8] sm:$0xff] %v478
                  %v480 = vld [vmem:[%s366 + $0x230] sm:$0xff]
                  %481 = vst [vmem:[%s367 + $0x1f8] sm:$0xff] %v480
                  %v482 = vld [vmem:[%s366 + $0x238] sm:$0xff]
                  %483 = vst [vmem:[%s367 + $0x200] sm:$0xff] %v482
                  %v484 = vld [vmem:[%s366 + $0x240] sm:$0xff]
                  %485 = vst [vmem:[%s367 + $0x208] sm:$0xff] %v484
                  %v486 = vld [vmem:[%s366 + $0x248] sm:$0xff]
                  %487 = vst [vmem:[%s367 + $0x210] sm:$0xff] %v486
                  %v488 = vld [vmem:[%s366 + $0x250] sm:$0xff]
                  %489 = vst [vmem:[%s367 + $0x218] sm:$0xff] %v488
                  %v490 = vld [vmem:[%s366 + $0x258] sm:$0xff]
                  %491 = vst [vmem:[%s367 + $0x220] sm:$0xff] %v490
                  %v492 = vld [vmem:[%s366 + $0x260] sm:$0xff]
                  %493 = vst [vmem:[%s367 + $0x228] sm:$0xff] %v492
                  %v494 = vld [vmem:[%s366 + $0x268] sm:$0xff]
                  %495 = vst [vmem:[%s367 + $0x230] sm:$0xff] %v494
                  %s496 = sadd.s32 1, %s365
                  %p497 = scmp.ge.s32.totalorder %s496, %s356
                  %s498 = scalar_select %p497, 0, %s496
                  %s499 = smul.u32 %s498, 64
                  %s500 = smul.u32 %s498, 64
                  %s501 = scalar_lea.vmem %s114, %s499
                  %s502 = scalar_lea.vmem %s103, %s500 [#allocation2]
                $region66: #{tpu_custom_call.1} parent=60 // loop_footer
                  %s362 = sadd.s32 %s360, 1
                $region67: #{tpu_custom_call.1} parent=60 // loop_footer_branch
                  %359 = sbr.rel target = $region63
                $region68: #{tpu_custom_call.1} parent=60 // loop_exit
                  _
                %s503 = sshrl.u32 %s355, 3
                %s504 = sand.u32 %s355, 7
                %s505 = smul.u32 %s503, 8
                %s506 = smul.u32 128, %s505
                %s507 = sshra.s32 %s506, 4
                %s508 = scalar_lea.vmem %s114, %s507
                %s509 = smul.u32 128, %s505
                %s510 = sshra.s32 %s509, 4
                %s511 = scalar_lea.vmem %s103, %s510 [#allocation2]
                // While loop
                $region69: #{tpu_custom_call.1} parent=60 // loop_pre_header
                  _
                $region70: #{tpu_custom_call.1} parent=60 // loop_header
                  %s515 = sphi 0, %s517
                  %p516 = scmp.ge.s32.totalorder %s515, %s504
                  %s520 = sphi 0, %s541
                  %s521 = sphi %s508, %s544
                  %s522 = sphi %s511, %s545
                $region71: #{tpu_custom_call.1} parent=60 // loop_header_branch
                  %519 = sbr.rel (%p516) target = $region75
                $region72: #{tpu_custom_call.1} parent=60 // loop_body
                  %v523 = vld [vmem:[%s521] sm:$0xff]
                  %524 = vst [vmem:[%s522] sm:$0xff] %v523
                  %v525 = vld [vmem:[%s521 + $0x50] sm:$0xff]
                  %526 = vst [vmem:[%s522 + $0x48] sm:$0xff] %v525
                  %v527 = vld [vmem:[%s521 + $0xa0] sm:$0xff]
                  %528 = vst [vmem:[%s522 + $0x90] sm:$0xff] %v527
                  %v529 = vld [vmem:[%s521 + $0xf0] sm:$0xff]
                  %530 = vst [vmem:[%s522 + $0xd8] sm:$0xff] %v529
                  %v531 = vld [vmem:[%s521 + $0x140] sm:$0xff]
                  %532 = vst [vmem:[%s522 + $0x120] sm:$0xff] %v531
                  %v533 = vld [vmem:[%s521 + $0x190] sm:$0xff]
                  %534 = vst [vmem:[%s522 + $0x168] sm:$0xff] %v533
                  %v535 = vld [vmem:[%s521 + $0x1e0] sm:$0xff]
                  %536 = vst [vmem:[%s522 + $0x1b0] sm:$0xff] %v535
                  %v537 = vld [vmem:[%s521 + $0x230] sm:$0xff]
                  %538 = vst [vmem:[%s522 + $0x1f8] sm:$0xff] %v537
                  %s539 = sadd.s32 1, %s520
                  %p540 = scmp.ge.s32.totalorder %s539, %s504
                  %s541 = scalar_select %p540, 0, %s539
                  %s542 = smul.u32 %s541, 8
                  %s543 = smul.u32 %s541, 8
                  %s544 = scalar_lea.vmem %s508, %s542
                  %s545 = scalar_lea.vmem %s511, %s543 [#allocation2]
                $region73: #{tpu_custom_call.1} parent=60 // loop_footer
                  %s517 = sadd.s32 %s515, 1
                $region74: #{tpu_custom_call.1} parent=60 // loop_footer_branch
                  %514 = sbr.rel target = $region70
                $region75: #{tpu_custom_call.1} parent=60 // loop_exit
                  _
                %s546 = sshllo.u32 0, %s350
                loop: start=0, step=1, limit=1
                $region76: #{tpu_custom_call.1} parent=60 // loop_pre_header
                  _
                $region77: #{tpu_custom_call.1} parent=60 // loop_header
                  %s548 = sphi 0, %s552
                  %p549 = scmp.ge.s32.totalorder %s548, 1
                  %s553 = sphi %s352, %s352
                  %s554 = sphi %s354, %s354
                $region78: #{tpu_custom_call.1} parent=60 // loop_header_branch
                  %551 = sbr.rel (%p549) target = $region82
                $region79: #{tpu_custom_call.1} parent=60 // loop_body
                  %v555 = vld [vmem:[%s553] sm:%s546]
                  %556 = vst [vmem:[%s554] sm:%s546] %v555
                  %v557 = vld [vmem:[%s553 + $0x50] sm:%s546]
                  %558 = vst [vmem:[%s554 + $0x48] sm:%s546] %v557
                  %v559 = vld [vmem:[%s553 + $0xa0] sm:%s546]
                  %560 = vst [vmem:[%s554 + $0x90] sm:%s546] %v559
                  %v561 = vld [vmem:[%s553 + $0xf0] sm:%s546]
                  %562 = vst [vmem:[%s554 + $0xd8] sm:%s546] %v561
                  %v563 = vld [vmem:[%s553 + $0x140] sm:%s546]
                  %564 = vst [vmem:[%s554 + $0x120] sm:%s546] %v563
                  %v565 = vld [vmem:[%s553 + $0x190] sm:%s546]
                  %566 = vst [vmem:[%s554 + $0x168] sm:%s546] %v565
                  %v567 = vld [vmem:[%s553 + $0x1e0] sm:%s546]
                  %568 = vst [vmem:[%s554 + $0x1b0] sm:%s546] %v567
                  %v569 = vld [vmem:[%s553 + $0x230] sm:%s546]
                  %570 = vst [vmem:[%s554 + $0x1f8] sm:%s546] %v569
                $region80: #{tpu_custom_call.1} parent=60 // loop_footer
                  %s552 = sadd.s32 1, %s548
                $region81: #{tpu_custom_call.1} parent=60 // loop_footer_branch
                  %547 = sbr.rel target = $region77
                $region82: #{tpu_custom_call.1} parent=60 // loop_exit
                  _
              $region61: #{tpu_custom_call.1} parent=27 // pred_fallthru
                _
            $region28: #{tpu_custom_call.1} parent=23 // pred_fallthru
              _
            // Predicated region
            $region29: #{tpu_custom_call.1} parent=23 // pred_check
              %p123 = pneg %p119
            $region30: #{tpu_custom_call.1} parent=23 // pred_check_branch
              %125 = sbr.rel (%p123) target = $region32
            $region31: #{tpu_custom_call.1} parent=23 // pred_region
              %s126 = sshllo.u32 0, %s115
              loop: start=0, step=1, limit=1
              $region33: #{tpu_custom_call.1} parent=31 // loop_pre_header
                _
              $region34: #{tpu_custom_call.1} parent=31 // loop_header
                %s128 = sphi 0, %s132
                %p129 = scmp.ge.s32.totalorder %s128, 1
                %s133 = sphi %s114, %s114
                %s134 = sphi %s103, %s103
              $region35: #{tpu_custom_call.1} parent=31 // loop_header_branch
                %131 = sbr.rel (%p129) target = $region39
              $region36: #{tpu_custom_call.1} parent=31 // loop_body
                %v135 = vld [vmem:[%s133] sm:%s126]
                %136 = vst [vmem:[%s134] sm:%s126] %v135
                %v137 = vld [vmem:[%s133 + $0x50] sm:%s126]
                %138 = vst [vmem:[%s134 + $0x48] sm:%s126] %v137
                %v139 = vld [vmem:[%s133 + $0xa0] sm:%s126]
                %140 = vst [vmem:[%s134 + $0x90] sm:%s126] %v139
                %v141 = vld [vmem:[%s133 + $0xf0] sm:%s126]
                %142 = vst [vmem:[%s134 + $0xd8] sm:%s126] %v141
                %v143 = vld [vmem:[%s133 + $0x140] sm:%s126]
                %144 = vst [vmem:[%s134 + $0x120] sm:%s126] %v143
                %v145 = vld [vmem:[%s133 + $0x190] sm:%s126]
                %146 = vst [vmem:[%s134 + $0x168] sm:%s126] %v145
                %v147 = vld [vmem:[%s133 + $0x1e0] sm:%s126]
                %148 = vst [vmem:[%s134 + $0x1b0] sm:%s126] %v147
                %v149 = vld [vmem:[%s133 + $0x230] sm:%s126]
                %150 = vst [vmem:[%s134 + $0x1f8] sm:%s126] %v149
              $region37: #{tpu_custom_call.1} parent=31 // loop_footer
                %s132 = sadd.s32 1, %s128
              $region38: #{tpu_custom_call.1} parent=31 // loop_footer_branch
                %127 = sbr.rel target = $region34
              $region39: #{tpu_custom_call.1} parent=31 // loop_exit
                _
            $region32: #{tpu_custom_call.1} parent=23 // pred_fallthru
              _
          $region24: #{tpu_custom_call.1} parent=19 // pred_fallthru
            _
          %571 = vnop
        $region20: #{tpu_custom_call.1} parent=15 // pred_fallthru
          _
      $region16: #{tpu_custom_call.1} parent=5 // pred_fallthru
        _
      %p572 = scmp.le.s32.totalorder 1, %s10
      %p573 = scmp.lt.s32.totalorder %s10, 9
      %p574 = pnand %p572, %p573
      %p575 = pneg %p574
      // Predicated region
      $region83: #{tpu_custom_call.1} parent=5 // pred_check
        _
      $region84: #{tpu_custom_call.1} parent=5 // pred_check_branch
        %577 = sbr.rel (%p574) target = $region86
      $region85: #{tpu_custom_call.1} parent=5 // pred_region
        %s578 = ssub.s32 %s10, 1
        %s579 = sand.u32 %s37, 1
        %s580 = sand.u32 %s37, 1
        %s581 = smul.addr %s580, 576
        %s582 = scalar_lea.vmem [#allocation2], %s581
        // Predicated region
        $region87: #{tpu_custom_call.1} parent=85 // pred_check
          %p583 = pneg %p50
        $region88: #{tpu_custom_call.1} parent=85 // pred_check_branch
          %585 = sbr.rel (%p583) target = $region90
        $region89: #{tpu_custom_call.1} parent=85 // pred_region
          _
        $region90: #{tpu_custom_call.1} parent=85 // pred_fallthru
          _
        %s586 = sand.u32 %s37, 1
        %s587 = sand.u32 %s37, 1
        %s588 = smul.addr %s587, 576
        %s589 = scalar_lea.vmem [#allocation2], %s588
        %p590 = pneg %p50
        %p591 = pneg %p47
        %p592 = pneg %p78
        %p593 = pneg %p75
        %s594 = sand.u32 %s65, 1
        %s595 = scalar_lea.sflag [#allocation4], %s594
        %s596 = sand.u32 %s65, 1
        %s597 = smul.addr %s596, 576
        %s598 = scalar_lea.vmem [#allocation3], %s597
        %s599 = smul.u32 8, %s19
        %s600 = smul.u32 9, %s20
        %s601 = ssub.s32 10, %s600
        %p602 = scmp.lt.s32.totalorder %s601, 9
        %s603 = scalar_select %p602, %s601, 9
        %s604 = smul.u32 1024, %s603
        %s605 = smul.u32 8, %s19
        %s606 = smul.u32 9, %s20
        %v607 = vld [vmem:[%s582] sm:$0xff]
        %v608 = vld [vmem:[%s582 + $0x8] sm:$0xff]
        %v609 = vld [vmem:[%s582 + $0x10] sm:$0xff]
        %v610 = vld [vmem:[%s582 + $0x18] sm:$0xff]
        %v611 = vld [vmem:[%s582 + $0x20] sm:$0xff]
        %v612 = vld [vmem:[%s582 + $0x28] sm:$0xff]
        %v613 = vld [vmem:[%s582 + $0x30] sm:$0xff]
        %v614 = vld [vmem:[%s582 + $0x38] sm:$0xff]
        %v615 = vld [vmem:[%s582 + $0x40] sm:$0xff]
        %v616 = vld [vmem:[%s582 + $0x48] sm:$0xff]
        %v617 = vld [vmem:[%s582 + $0x50] sm:$0xff]
        %v618 = vld [vmem:[%s582 + $0x58] sm:$0xff]
        %v619 = vld [vmem:[%s582 + $0x60] sm:$0xff]
        %v620 = vld [vmem:[%s582 + $0x68] sm:$0xff]
        %v621 = vld [vmem:[%s582 + $0x70] sm:$0xff]
        %v622 = vld [vmem:[%s582 + $0x78] sm:$0xff]
        %v623 = vld [vmem:[%s582 + $0x80] sm:$0xff]
        %v624 = vld [vmem:[%s582 + $0x88] sm:$0xff]
        %v625 = vld [vmem:[%s582 + $0x90] sm:$0xff]
        %v626 = vld [vmem:[%s582 + $0x98] sm:$0xff]
        %v627 = vld [vmem:[%s582 + $0xa0] sm:$0xff]
        %v628 = vld [vmem:[%s582 + $0xa8] sm:$0xff]
        %v629 = vld [vmem:[%s582 + $0xb0] sm:$0xff]
        %v630 = vld [vmem:[%s582 + $0xb8] sm:$0xff]
        %v631 = vld [vmem:[%s582 + $0xc0] sm:$0xff]
        %v632 = vld [vmem:[%s582 + $0xc8] sm:$0xff]
        %v633 = vld [vmem:[%s582 + $0xd0] sm:$0xff]
        %v634 = vld [vmem:[%s582 + $0xd8] sm:$0xff]
        %v635 = vld [vmem:[%s582 + $0xe0] sm:$0xff]
        %v636 = vld [vmem:[%s582 + $0xe8] sm:$0xff]
        %v637 = vld [vmem:[%s582 + $0xf0] sm:$0xff]
        %v638 = vld [vmem:[%s582 + $0xf8] sm:$0xff]
        %v639 = vld [vmem:[%s582 + $0x100] sm:$0xff]
        %v640 = vld [vmem:[%s582 + $0x108] sm:$0xff]
        %v641 = vld [vmem:[%s582 + $0x110] sm:$0xff]
        %v642 = vld [vmem:[%s582 + $0x118] sm:$0xff]
        %v643 = vld [vmem:[%s582 + $0x120] sm:$0xff]
        %v644 = vld [vmem:[%s582 + $0x128] sm:$0xff]
        %v645 = vld [vmem:[%s582 + $0x130] sm:$0xff]
        %v646 = vld [vmem:[%s582 + $0x138] sm:$0xff]
        %v647 = vld [vmem:[%s582 + $0x140] sm:$0xff]
        %v648 = vld [vmem:[%s582 + $0x148] sm:$0xff]
        %v649 = vld [vmem:[%s582 + $0x150] sm:$0xff]
        %v650 = vld [vmem:[%s582 + $0x158] sm:$0xff]
        %v651 = vld [vmem:[%s582 + $0x160] sm:$0xff]
        %v652 = vld [vmem:[%s582 + $0x168] sm:$0xff]
        %v653 = vld [vmem:[%s582 + $0x170] sm:$0xff]
        %v654 = vld [vmem:[%s582 + $0x178] sm:$0xff]
        %v655 = vld [vmem:[%s582 + $0x180] sm:$0xff]
        %v656 = vld [vmem:[%s582 + $0x188] sm:$0xff]
        %v657 = vld [vmem:[%s582 + $0x190] sm:$0xff]
        %v658 = vld [vmem:[%s582 + $0x198] sm:$0xff]
        %v659 = vld [vmem:[%s582 + $0x1a0] sm:$0xff]
        %v660 = vld [vmem:[%s582 + $0x1a8] sm:$0xff]
        %v661 = vld [vmem:[%s582 + $0x1b0] sm:$0xff]
        %v662 = vld [vmem:[%s582 + $0x1b8] sm:$0xff]
        %v663 = vld [vmem:[%s582 + $0x1c0] sm:$0xff]
        %v664 = vld [vmem:[%s582 + $0x1c8] sm:$0xff]
        %v665 = vld [vmem:[%s582 + $0x1d0] sm:$0xff]
        %v666 = vld [vmem:[%s582 + $0x1d8] sm:$0xff]
        %v667 = vld [vmem:[%s582 + $0x1e0] sm:$0xff]
        %v668 = vld [vmem:[%s582 + $0x1e8] sm:$0xff]
        %v669 = vld [vmem:[%s582 + $0x1f0] sm:$0xff]
        %v670 = vld [vmem:[%s582 + $0x1f8] sm:$0xff]
        %v671 = vld [vmem:[%s582 + $0x200] sm:$0xff]
        %v672 = vld [vmem:[%s582 + $0x208] sm:$0xff]
        %v673 = vld [vmem:[%s582 + $0x210] sm:$0xff]
        %v674 = vld [vmem:[%s582 + $0x218] sm:$0xff]
        %v675 = vld [vmem:[%s582 + $0x220] sm:$0xff]
        %v676 = vld [vmem:[%s582 + $0x228] sm:$0xff]
        %v677 = vld [vmem:[%s582 + $0x230] sm:$0xff]
        %v678 = vld [vmem:[%s582 + $0x238] sm:$0xff]
        %679 = vst [vmem:[%s598] sm:$0xff] %v607
        %680 = vst [vmem:[%s598 + $0x8] sm:$0xff] %v608
        %681 = vst [vmem:[%s598 + $0x10] sm:$0xff] %v609
        %682 = vst [vmem:[%s598 + $0x18] sm:$0xff] %v610
        %683 = vst [vmem:[%s598 + $0x20] sm:$0xff] %v611
        %684 = vst [vmem:[%s598 + $0x28] sm:$0xff] %v612
        %685 = vst [vmem:[%s598 + $0x30] sm:$0xff] %v613
        %686 = vst [vmem:[%s598 + $0x38] sm:$0xff] %v614
        %687 = vst [vmem:[%s598 + $0x40] sm:$0xff] %v615
        %688 = vst [vmem:[%s598 + $0x48] sm:$0xff] %v616
        %689 = vst [vmem:[%s598 + $0x50] sm:$0xff] %v617
        %690 = vst [vmem:[%s598 + $0x58] sm:$0xff] %v618
        %691 = vst [vmem:[%s598 + $0x60] sm:$0xff] %v619
        %692 = vst [vmem:[%s598 + $0x68] sm:$0xff] %v620
        %693 = vst [vmem:[%s598 + $0x70] sm:$0xff] %v621
        %694 = vst [vmem:[%s598 + $0x78] sm:$0xff] %v622
        %695 = vst [vmem:[%s598 + $0x80] sm:$0xff] %v623
        %696 = vst [vmem:[%s598 + $0x88] sm:$0xff] %v624
        %697 = vst [vmem:[%s598 + $0x90] sm:$0xff] %v625
        %698 = vst [vmem:[%s598 + $0x98] sm:$0xff] %v626
        %699 = vst [vmem:[%s598 + $0xa0] sm:$0xff] %v627
        %700 = vst [vmem:[%s598 + $0xa8] sm:$0xff] %v628
        %701 = vst [vmem:[%s598 + $0xb0] sm:$0xff] %v629
        %702 = vst [vmem:[%s598 + $0xb8] sm:$0xff] %v630
        %703 = vst [vmem:[%s598 + $0xc0] sm:$0xff] %v631
        %704 = vst [vmem:[%s598 + $0xc8] sm:$0xff] %v632
        %705 = vst [vmem:[%s598 + $0xd0] sm:$0xff] %v633
        %706 = vst [vmem:[%s598 + $0xd8] sm:$0xff] %v634
        %707 = vst [vmem:[%s598 + $0xe0] sm:$0xff] %v635
        %708 = vst [vmem:[%s598 + $0xe8] sm:$0xff] %v636
        %709 = vst [vmem:[%s598 + $0xf0] sm:$0xff] %v637
        %710 = vst [vmem:[%s598 + $0xf8] sm:$0xff] %v638
        %711 = vst [vmem:[%s598 + $0x100] sm:$0xff] %v639
        %712 = vst [vmem:[%s598 + $0x108] sm:$0xff] %v640
        %713 = vst [vmem:[%s598 + $0x110] sm:$0xff] %v641
        %714 = vst [vmem:[%s598 + $0x118] sm:$0xff] %v642
        %715 = vst [vmem:[%s598 + $0x120] sm:$0xff] %v643
        %716 = vst [vmem:[%s598 + $0x128] sm:$0xff] %v644
        %717 = vst [vmem:[%s598 + $0x130] sm:$0xff] %v645
        %718 = vst [vmem:[%s598 + $0x138] sm:$0xff] %v646
        %719 = vst [vmem:[%s598 + $0x140] sm:$0xff] %v647
        %720 = vst [vmem:[%s598 + $0x148] sm:$0xff] %v648
        %721 = vst [vmem:[%s598 + $0x150] sm:$0xff] %v649
        %722 = vst [vmem:[%s598 + $0x158] sm:$0xff] %v650
        %723 = vst [vmem:[%s598 + $0x160] sm:$0xff] %v651
        %724 = vst [vmem:[%s598 + $0x168] sm:$0xff] %v652
        %725 = vst [vmem:[%s598 + $0x170] sm:$0xff] %v653
        %726 = vst [vmem:[%s598 + $0x178] sm:$0xff] %v654
        %727 = vst [vmem:[%s598 + $0x180] sm:$0xff] %v655
        %728 = vst [vmem:[%s598 + $0x188] sm:$0xff] %v656
        %729 = vst [vmem:[%s598 + $0x190] sm:$0xff] %v657
        %730 = vst [vmem:[%s598 + $0x198] sm:$0xff] %v658
        %731 = vst [vmem:[%s598 + $0x1a0] sm:$0xff] %v659
        %732 = vst [vmem:[%s598 + $0x1a8] sm:$0xff] %v660
        %733 = vst [vmem:[%s598 + $0x1b0] sm:$0xff] %v661
        %734 = vst [vmem:[%s598 + $0x1b8] sm:$0xff] %v662
        %735 = vst [vmem:[%s598 + $0x1c0] sm:$0xff] %v663
        %736 = vst [vmem:[%s598 + $0x1c8] sm:$0xff] %v664
        %737 = vst [vmem:[%s598 + $0x1d0] sm:$0xff] %v665
        %738 = vst [vmem:[%s598 + $0x1d8] sm:$0xff] %v666
        %739 = vst [vmem:[%s598 + $0x1e0] sm:$0xff] %v667
        %740 = vst [vmem:[%s598 + $0x1e8] sm:$0xff] %v668
        %741 = vst [vmem:[%s598 + $0x1f0] sm:$0xff] %v669
        %742 = vst [vmem:[%s598 + $0x1f8] sm:$0xff] %v670
        %743 = vst [vmem:[%s598 + $0x200] sm:$0xff] %v671
        %744 = vst [vmem:[%s598 + $0x208] sm:$0xff] %v672
        %745 = vst [vmem:[%s598 + $0x210] sm:$0xff] %v673
        %746 = vst [vmem:[%s598 + $0x218] sm:$0xff] %v674
        %747 = vst [vmem:[%s598 + $0x220] sm:$0xff] %v675
        %748 = vst [vmem:[%s598 + $0x228] sm:$0xff] %v676
        %749 = vst [vmem:[%s598 + $0x230] sm:$0xff] %v677
        %750 = vst [vmem:[%s598 + $0x238] sm:$0xff] %v678
        %s751 = sand.u32 %s65, 1
        %s752 = scalar_lea.sflag [#allocation4], %s751
        %s753 = sand.u32 %s65, 1
        %s754 = smul.addr %s753, 576
        %s755 = scalar_lea.vmem [#allocation3], %s754
        // Predicated region
        $region91: #{tpu_custom_call.1} parent=85 // pred_check
          %p756 = pneg %p75
        $region92: #{tpu_custom_call.1} parent=85 // pred_check_branch
          %758 = sbr.rel (%p756) target = $region94
        $region93: #{tpu_custom_call.1} parent=85 // pred_region
          %s759 = smul.u32 8, %s19
          %s760 = smul.u32 9, %s20
          %s762 = ssub.s32 9216, 9216
          %763 = vsyncadd %s752, %s762
          %s764 = smul.addr %s759, 9
          %s765 = sadd.s32 %s760, %s764
          %s766 = smul.addr %s765, 128
          %s767 = scalar_lea.hbm %s1, %s766
          %s768 = sshll.u32 %s755, 4
          %s769 = int_to_ptr.vmem [resolvable:$true] %s768
          %774 = dma.vmem_to_hbm [thread:$0]  %s769, 9216, %s767, %s752, 1152, 1152, 72
        $region94: #{tpu_custom_call.1} parent=85 // pred_fallthru
          _
      $region86: #{tpu_custom_call.1} parent=5 // pred_fallthru
        _
      %p775 = scmp.le.s32.totalorder 2, %s10
      // Predicated region
      $region95: #{tpu_custom_call.1} parent=5 // pred_check
        %p776 = pneg %p775
      $region96: #{tpu_custom_call.1} parent=5 // pred_check_branch
        %778 = sbr.rel (%p776) target = $region98
      $region97: #{tpu_custom_call.1} parent=5 // pred_region
        %s779 = ssub.s32 %s10, 2
        // Predicated region
        $region99: #{tpu_custom_call.1} parent=97 // pred_check
          %p780 = pneg %p81
        $region100: #{tpu_custom_call.1} parent=97 // pred_check_branch
          %782 = sbr.rel (%p780) target = $region102
        $region101: #{tpu_custom_call.1} parent=97 // pred_region
          %s783 = sand.u32 %s66, 1
          %s784 = scalar_lea.sflag [#allocation4], %s783
          %s785 = sand.u32 %s66, 1
          %s786 = smul.addr %s785, 576
          %s787 = scalar_lea.vmem [#allocation3], %s786
          %788 = dma.done %s784, 9216
        $region102: #{tpu_custom_call.1} parent=97 // pred_fallthru
          _
      $region98: #{tpu_custom_call.1} parent=5 // pred_fallthru
        _
    $region6: #{tpu_custom_call.1} parent=1 // loop_footer
      %s14 = sadd.s32 1, %s10
    $region7: #{tpu_custom_call.1} parent=1 // loop_footer_branch
      %9 = sbr.rel target = $region3
    $region8: #{tpu_custom_call.1} parent=1 // loop_exit
      _
    %789 = vsyncpa [#allocation4], 1
    %s790 = scalar_lea.sflag [#allocation4], 1
    %791 = vsyncpa %s790, 1

</llo_original>
